<compile_context>
chip_gen: v6e
topology: v6e:2x2x1
jax: 0.10.0
libtpu: 0.0.40
codegen_flags: <defaults>
</compile_context>

<pallas_src>
import jax
import jax.numpy as jnp
import numpy as np
from jax.experimental import pallas as pl
from jax.experimental.pallas import tpu as pltpu


def _lfarn_kernel(a_ref, x_ref, w1_ref, b1_ref, w2_ref, b2_ref, out_ref, h1_acc):
    k = pl.program_id(1)

    @pl.when(k == 0)
    def _init():
        h1_acc[...] = jnp.zeros_like(h1_acc)

    # Partial message passing: H1[:, f-tile] += A[:, k-slab] @ X[k-slab, f-tile]
    h1_acc[...] += jnp.dot(a_ref[...], x_ref[...],
                           preferred_element_type=jnp.float32)

    @pl.when(k == pl.num_programs(1) - 1)
    def _finalize():
        # h = relu(W1 @ H1 + b1)  -> (hidden, TILE_F)
        h = jnp.dot(w1_ref[...], h1_acc[...],
                    preferred_element_type=jnp.float32) + b1_ref[...]
        h = jnp.maximum(h, 0.0)
        # out = W2 @ h + b2       -> (out, TILE_F), written in final layout
        out = jnp.dot(w2_ref[...], h,
                      preferred_element_type=jnp.float32) + b2_ref[...]
        out_ref[...] = out.astype(out_ref.dtype)


def lfarn(A, x, w1, b1, w2, b2, *, tile_f=128):
    """Pallas LFARN forward. Returns (out_dim, F)."""
    N, F = x.shape
    hidden = w1.shape[0]
    out_dim = w2.shape[0]

    # Fail loudly on inconsistent shapes instead of deep inside Mosaic lowering.
    assert A.shape == (N, N), f"A must be (N, N) with N == in_dim, got {A.shape}"
    assert w1.shape == (hidden, N), f"w1 must be (hidden, N={N}), got {w1.shape}"
    assert b1.shape == (hidden,), f"b1 must be ({hidden},), got {b1.shape}"
    assert w2.shape == (out_dim, hidden), f"w2 must be (out, hidden={hidden}), got {w2.shape}"
    assert b2.shape == (out_dim,), f"b2 must be ({out_dim},), got {b2.shape}"

    # Contraction tile over N (columns of A / rows of X); 128-lane aligned when possible.
    tile_k = 128 if N % 128 == 0 else N
    num_k = N // tile_k

    # Pad F to a lane-dense multiple of tile_f (sliced off after the call).
    f_pad = (-F) % tile_f
    Fp = F + f_pad
    if f_pad:
        x = jnp.pad(x, ((0, 0), (0, f_pad)))
    num_f = Fp // tile_f

    # Biases as column vectors: one broadcast-add along lanes, no (1, H) VMEM tiles.
    b1c = b1.reshape(hidden, 1).astype(jnp.float32)
    b2c = b2.reshape(out_dim, 1).astype(jnp.float32)

    # Conservative VMEM budget guard (stay under the default scoped limit on
    # v5e/v6e/v7x; assume every input/output spec is double-buffered).
    isz = 4
    resident = (N * tile_k + hidden * N + out_dim * hidden + hidden + out_dim) * isz
    streamed = (tile_k * tile_f + out_dim * tile_f) * isz
    scratch = N * tile_f * isz
    vmem_bytes = 2 * (resident + streamed) + scratch
    assert vmem_bytes < 12 * 1024 * 1024, (
        f"Estimated VMEM working set {vmem_bytes / 2**20:.1f} MiB exceeds budget; "
        "shrink tile_f / tile_k (A is streamed in (N, tile_k) slabs) or raise "
        "vmem_limit_bytes in CompilerParams.")

    grid_spec = pltpu.PrefetchScalarGridSpec(
        num_scalar_prefetch=0,
        grid=(num_f, num_k),
        in_specs=[
            pl.BlockSpec((N, tile_k), lambda j, k: (0, k)),        # A column slab
            pl.BlockSpec((tile_k, tile_f), lambda j, k: (k, j)),   # X tile (streamed)
            pl.BlockSpec((hidden, N), lambda j, k: (0, 0)),        # W1 (resident)
            pl.BlockSpec((hidden, 1), lambda j, k: (0, 0)),        # b1 column
            pl.BlockSpec((out_dim, hidden), lambda j, k: (0, 0)),  # W2 (resident)
            pl.BlockSpec((out_dim, 1), lambda j, k: (0, 0)),       # b2 column
        ],
        out_specs=pl.BlockSpec((out_dim, tile_f), lambda j, k: (0, j)),
        scratch_shapes=[pltpu.VMEM((N, tile_f), jnp.float32)],     # H1 accumulator
    )

    out = pl.pallas_call(
        _lfarn_kernel,
        out_shape=jax.ShapeDtypeStruct((out_dim, Fp), jnp.float32),
        grid_spec=grid_spec,
        compiler_params=pltpu.CompilerParams(
            dimension_semantics=("parallel", "arbitrary")),
    )(A.astype(jnp.float32), x.astype(jnp.float32),
      w1.astype(jnp.float32), b1c, w2.astype(jnp.float32), b2c)

    return out[:, :F] if f_pad else out


def lfarn_ref(A, x, w1, b1, w2, b2):
    H1 = A @ x                                    # (N, F)
    h = jnp.maximum(H1.T @ w1.T + b1, 0.0)        # (F, hidden)
    return (h @ w2.T + b2).T                      # (out, F)


if __name__ == "__main__":
    # in_dim = N = 256 graph nodes, F = 256 feature columns,
    # hidden_dim = 128, out_dim = 64 (out_dim need not equal hidden_dim).
    N, F, HIDDEN, OUT = 256, 256, 128, 64

    key = jax.random.PRNGKey(0)
    k_a, k_x, k_w1, k_b1, k_w2, k_b2 = jax.random.split(key, 6)

    # Deterministic "graph": random binary adjacency (sum message passing).
    A = (jax.random.uniform(k_a, (N, N)) < 0.1).astype(jnp.float32)
    x = jax.random.normal(k_x, (N, F), dtype=jnp.float32)

    # torch-Linear-like uniform init.
    lim1 = 1.0 / np.sqrt(N)
    lim2 = 1.0 / np.sqrt(HIDDEN)
    w1 = jax.random.uniform(k_w1, (HIDDEN, N), minval=-lim1, maxval=lim1, dtype=jnp.float32)
    b1 = jax.random.uniform(k_b1, (HIDDEN,), minval=-lim1, maxval=lim1, dtype=jnp.float32)
    w2 = jax.random.uniform(k_w2, (OUT, HIDDEN), minval=-lim2, maxval=lim2, dtype=jnp.float32)
    b2 = jax.random.uniform(k_b2, (OUT,), minval=-lim2, maxval=lim2, dtype=jnp.float32)

    out = lfarn(A, x, w1, b1, w2, b2)
    jax.block_until_ready(out)

    ref = lfarn_ref(A, x, w1, b1, w2, b2)
    np.testing.assert_allclose(np.asarray(out), np.asarray(ref), rtol=1e-4, atol=1e-4)
    assert out.shape == (OUT, F)

    print("KERNEL_OK")
</pallas_src>

<mosaic_0001>
module attributes {stable_mosaic.version = 11 : i64} {
  func.func @_lfarn_kernel(%arg0: i32, %arg1: i32, %arg2: memref<256x128xf32, #tpu.memory_space<vmem>>, %arg3: memref<128x128xf32, #tpu.memory_space<vmem>>, %arg4: memref<128x256xf32, #tpu.memory_space<vmem>>, %arg5: memref<128x1xf32, #tpu.memory_space<vmem>>, %arg6: memref<64x128xf32, #tpu.memory_space<vmem>>, %arg7: memref<64x1xf32, #tpu.memory_space<vmem>>, %arg8: memref<64x128xf32, #tpu.memory_space<vmem>>, %arg9: memref<256x128xf32, #tpu.memory_space<vmem>>) attributes {dimension_semantics = [#tpu.dimension_semantics<parallel>, #tpu.dimension_semantics<arbitrary>], iteration_bounds = array<i64: 2, 2>, scalar_prefetch = 0 : i64, scratch_operands = 1 : i64, tpu.core_type = #tpu.core_type<tc>, window_params = [{transform_indices = @transform_0, window_bounds = array<i64: 256, 128>}, {transform_indices = @transform_1, window_bounds = array<i64: 128, 128>}, {pipeline_mode = #tpu.pipeline_mode<synchronous>, transform_indices = @transform_2, window_bounds = array<i64: 128, 256>}, {pipeline_mode = #tpu.pipeline_mode<synchronous>, transform_indices = @transform_3, window_bounds = array<i64: 128, 1>}, {pipeline_mode = #tpu.pipeline_mode<synchronous>, transform_indices = @transform_4, window_bounds = array<i64: 64, 128>}, {pipeline_mode = #tpu.pipeline_mode<synchronous>, transform_indices = @transform_5, window_bounds = array<i64: 64, 1>}, {transform_indices = @transform_6, window_bounds = array<i64: 64, 128>}]} {
    %c0_i32 = arith.constant 0 : i32
    %0 = arith.cmpi eq, %arg1, %c0_i32 : i32
    %1 = arith.extui %0 : i1 to i32
    %c0_i32_0 = arith.constant 0 : i32
    %2 = arith.cmpi ne, %1, %c0_i32_0 : i32
    scf.if %2 {
      %cst_9 = arith.constant 0.000000e+00 : f32
      %12 = vector.broadcast %cst_9 : f32 to vector<256x128xf32>
      %c0_10 = arith.constant 0 : index
      %c0_11 = arith.constant 0 : index
      %13 = vector.load %arg9[%c0_10, %c0_11] : memref<256x128xf32, #tpu.memory_space<vmem>>, vector<256x128xf32>
      tpu.vector_store %arg9[%c0_10, %c0_11], %12 {strides = array<i32>} : memref<256x128xf32, #tpu.memory_space<vmem>>, vector<256x128xf32>,
    } else {
    }
    %c0 = arith.constant 0 : index
    %c0_1 = arith.constant 0 : index
    %3 = vector.load %arg9[%c0, %c0_1] : memref<256x128xf32, #tpu.memory_space<vmem>>, vector<256x128xf32>
    %c0_2 = arith.constant 0 : index
    %c0_3 = arith.constant 0 : index
    %4 = vector.load %arg2[%c0_2, %c0_3] : memref<256x128xf32, #tpu.memory_space<vmem>>, vector<256x128xf32>
    %c0_4 = arith.constant 0 : index
    %c0_5 = arith.constant 0 : index
    %5 = vector.load %arg3[%c0_4, %c0_5] : memref<128x128xf32, #tpu.memory_space<vmem>>, vector<128x128xf32>
    %cst = arith.constant dense<0.000000e+00> : vector<256x128xf32>
    %6 = tpu.matmul %4, %5, %cst {dimension_numbers = #tpu.dot_dimension_numbers<[1], [0], [0], [1], [0, 0, 1, 1], [], []>} : vector<256x128xf32>, vector<128x128xf32>, vector<256x128xf32> -> vector<256x128xf32>
    %7 = arith.addf %3, %6 : vector<256x128xf32>
    %c0_6 = arith.constant 0 : index
    %c0_7 = arith.constant 0 : index
    %8 = vector.load %arg9[%c0_6, %c0_7] : memref<256x128xf32, #tpu.memory_space<vmem>>, vector<256x128xf32>
    tpu.vector_store %arg9[%c0_6, %c0_7], %7 {strides = array<i32>} : memref<256x128xf32, #tpu.memory_space<vmem>>, vector<256x128xf32>,
    %c1_i32 = arith.constant 1 : i32
    %9 = arith.cmpi eq, %arg1, %c1_i32 : i32
    %10 = arith.extui %9 : i1 to i32
    %c0_i32_8 = arith.constant 0 : i32
    %11 = arith.cmpi ne, %10, %c0_i32_8 : i32
    scf.if %11 {
      %c0_9 = arith.constant 0 : index
      %c0_10 = arith.constant 0 : index
      %12 = vector.load %arg4[%c0_9, %c0_10] : memref<128x256xf32, #tpu.memory_space<vmem>>, vector<128x256xf32>
      %c0_11 = arith.constant 0 : index
      %c0_12 = arith.constant 0 : index
      %13 = vector.load %arg9[%c0_11, %c0_12] : memref<256x128xf32, #tpu.memory_space<vmem>>, vector<256x128xf32>
      %cst_13 = arith.constant dense<0.000000e+00> : vector<128x128xf32>
      %14 = tpu.matmul %12, %13, %cst_13 {dimension_numbers = #tpu.dot_dimension_numbers<[1], [0], [0], [1], [0, 0, 1, 1], [], []>} : vector<128x256xf32>, vector<256x128xf32>, vector<128x128xf32> -> vector<128x128xf32>
      %c0_14 = arith.constant 0 : index
      %c0_15 = arith.constant 0 : index
      %15 = vector.load %arg5[%c0_14, %c0_15] : memref<128x1xf32, #tpu.memory_space<vmem>>, vector<128x1xf32>
      %16 = vector.broadcast %15 : vector<128x1xf32> to vector<128x128xf32>
      %17 = arith.addf %14, %16 : vector<128x128xf32>
      %cst_16 = arith.constant 0.000000e+00 : f32
      %18 = vector.broadcast %cst_16 : f32 to vector<128x128xf32>
      %19 = arith.maximumf %17, %18 : vector<128x128xf32>
      %c0_17 = arith.constant 0 : index
      %c0_18 = arith.constant 0 : index
      %20 = vector.load %arg6[%c0_17, %c0_18] : memref<64x128xf32, #tpu.memory_space<vmem>>, vector<64x128xf32>
      %cst_19 = arith.constant dense<0.000000e+00> : vector<64x128xf32>
      %21 = tpu.matmul %20, %19, %cst_19 {dimension_numbers = #tpu.dot_dimension_numbers<[1], [0], [0], [1], [0, 0, 1, 1], [], []>} : vector<64x128xf32>, vector<128x128xf32>, vector<64x128xf32> -> vector<64x128xf32>
      %c0_20 = arith.constant 0 : index
      %c0_21 = arith.constant 0 : index
      %22 = vector.load %arg7[%c0_20, %c0_21] : memref<64x1xf32, #tpu.memory_space<vmem>>, vector<64x1xf32>
      %23 = vector.broadcast %22 : vector<64x1xf32> to vector<64x128xf32>
      %24 = arith.addf %21, %23 : vector<64x128xf32>
      %c0_22 = arith.constant 0 : index
      %c0_23 = arith.constant 0 : index
      %25 = vector.load %arg8[%c0_22, %c0_23] : memref<64x128xf32, #tpu.memory_space<vmem>>, vector<64x128xf32>
      tpu.vector_store %arg8[%c0_22, %c0_23], %24 {strides = array<i32>} : memref<64x128xf32, #tpu.memory_space<vmem>>, vector<64x128xf32>,
    } else {
    }
    return
  }
  func.func @transform_0(%arg0: i32, %arg1: i32) -> (i32, i32) {
    %c0_i32 = arith.constant 0 : i32
    %c0_i32_0 = arith.constant 0 : i32
    return %c0_i32, %arg1 : i32, i32
  }
  func.func @transform_1(%arg0: i32, %arg1: i32) -> (i32, i32) {
    %c0_i32 = arith.constant 0 : i32
    return %arg1, %arg0 : i32, i32
  }
  func.func @transform_2(%arg0: i32, %arg1: i32) -> (i32, i32) {
    %c0_i32 = arith.constant 0 : i32
    %c0_i32_0 = arith.constant 0 : i32
    %c0_i32_1 = arith.constant 0 : i32
    return %c0_i32, %c0_i32_0 : i32, i32
  }
  func.func @transform_3(%arg0: i32, %arg1: i32) -> (i32, i32) {
    %c0_i32 = arith.constant 0 : i32
    %c0_i32_0 = arith.constant 0 : i32
    %c0_i32_1 = arith.constant 0 : i32
    return %c0_i32, %c0_i32_0 : i32, i32
  }
  func.func @transform_4(%arg0: i32, %arg1: i32) -> (i32, i32) {
    %c0_i32 = arith.constant 0 : i32
    %c0_i32_0 = arith.constant 0 : i32
    %c0_i32_1 = arith.constant 0 : i32
    return %c0_i32, %c0_i32_0 : i32, i32
  }
  func.func @transform_5(%arg0: i32, %arg1: i32) -> (i32, i32) {
    %c0_i32 = arith.constant 0 : i32
    %c0_i32_0 = arith.constant 0 : i32
    %c0_i32_1 = arith.constant 0 : i32
    return %c0_i32, %c0_i32_0 : i32, i32
  }
  func.func @transform_6(%arg0: i32, %arg1: i32) -> (i32, i32) {
    %c0_i32 = arith.constant 0 : i32
    %c0_i32_0 = arith.constant 0 : i32
    return %c0_i32, %arg0 : i32, i32
  }
}

</mosaic_0001>

<llo_original>
// kernel: tpu_custom_call.1
$region0: #{tpu_custom_call.1}
  #allocation0 [shape = 'u32[]', space=smem, size = 0x4, offset = 0x4, fixed_abs, tag = 'smem constant byte address 0x4 - core index']
  #allocation1 [shape = 'u32[144,128]{1,0:T(1,128)}', space=vmem, size = 0x12000, scoped, tag = 'internal scratch']
  #allocation2 [shape = 'f32[256,128]{1,0:T(8,128)}', space=vmem, size = 0x20000, scoped, tag = 'scratch operand']
  %s0 = inlined_call_operand.hbm [shape: f32[256,256], index: 0, kind: input, shape index: {}]
  %s1 = inlined_call_operand.hbm [shape: f32[256,256], index: 1, kind: input, shape index: {}]
  %s2 = inlined_call_operand.hbm [shape: f32[128,256], index: 2, kind: input, shape index: {}]
  %s3 = inlined_call_operand.vmem [shape: f32[128,1], index: 3, kind: input, shape index: {}]
  %s4 = inlined_call_operand.vmem [shape: f32[64,128], index: 4, kind: input, shape index: {}]
  %s5 = inlined_call_operand.vmem [shape: f32[64,1], index: 5, kind: input, shape index: {}]
  %s6 = inlined_call_operand.hbm [shape: f32[64,256], index: 6, kind: output, shape index: {}]
  %s7 = sld [smem:[#allocation0]]
  $region77: #{tpu_custom_call.1} parent=0
    _
  %s9 = ssub.s32 1, %s7
  %s10 = scalar_select 0, %s9, %s7
  $region1: #{tpu_custom_call.1} parent=0
    #allocation3 [shape = 'u8[262144]{0}', space=vmem, size = 0x40000, scoped, tag = 'input window, operand 0']
    #allocation4 [shape = 's32[2]{0}', space=sflag, size = 0x8, scoped, tag = 'scoped memory for tpu_custom_call.1']
    #allocation5 [shape = 's32[2]{0}', space=sflag, size = 0x8, scoped, tag = 'scoped memory for tpu_custom_call.1']
    #allocation6 [shape = 'u8[131072]{0}', space=vmem, size = 0x20000, scoped, tag = 'input window, operand 1']
    #allocation7 [shape = 's32[2]{0}', space=sflag, size = 0x8, scoped, tag = 'scoped memory for tpu_custom_call.1']
    #allocation8 [shape = 'u8[131072]{0}', space=vmem, size = 0x20000, scoped, tag = 'input window, operand 2, single buffered']
    #allocation9 [shape = 'u8[65536]{0}', space=vmem, size = 0x10000, scoped, tag = 'output window, operand 0']
    %11 = vsyncpa [#allocation4], 0
    %s12 = scalar_lea.sflag [#allocation4], 1
    %13 = vsyncpa %s12, 0
    %14 = vsyncpa [#allocation7], 0
    %s15 = scalar_lea.sflag [#allocation7], 1
    %16 = vsyncpa %s15, 0
    %17 = vsyncpa [#allocation5], 0
    %s18 = scalar_lea.sflag [#allocation5], 1
    %19 = vsyncpa %s18, 0
    loop: start=0, step=1, limit=6
    $region2: #{tpu_custom_call.1} parent=1 // loop_pre_header
      _
    $region3: #{tpu_custom_call.1} parent=1 // loop_header
      %s21 = sphi 0, %s25
      %p22 = scmp.ge.s32.totalorder %s21, 6
      %s28 = sphi 0, %s40
      %s29 = sphi 0, %s36
      %s30 = sphi 0, %s28
      %s31 = sphi 0, %s29
      %s32 = sphi 0, %s30
      %s33 = sphi 0, %s31
      %s43 = sphi 0, %s45
      %s46 = sphi 0, %s43
      %s47 = sphi 0, %s46
      %s63 = sphi 0, %s47
      %s71 = sphi 0, %s73
      %s74 = sphi 0, %s71
      %s75 = sphi 0, %s74
      %s91 = sphi 0, %s75
      %s95 = sphi 0, %s95
      %s97 = sphi 0, %s95
      %s98 = sphi 0, %s97
      %s112 = sphi 0, %s98
      %s116 = sphi 0, %s116
      %s118 = sphi 0, %s116
      %s119 = sphi 0, %s118
      %s133 = sphi 0, %s119
      %s137 = sphi 0, %s137
      %s139 = sphi 0, %s137
      %s140 = sphi 0, %s139
      %s154 = sphi 0, %s140
      %s158 = sphi 0, %s158
      %s160 = sphi 0, %s158
      %s161 = sphi 0, %s160
      %s175 = sphi 0, %s161
      %s181 = sphi 0, %s183
      %s184 = sphi 0, %s181
      %s185 = sphi 0, %s184
      %s201 = sphi 0, %s185
    $region4: #{tpu_custom_call.1} parent=1 // loop_header_branch
      %24 = sbr.rel (%p22) target = $region8
    $region5: #{tpu_custom_call.1} parent=1 // loop_body
      %s26 = ssub.s32 %s21, 1
      %s27 = ssub.s32 %s21, 2
      %s34 = sadd.s32 1, %s29
      %p35 = scmp.ge.s32.totalorder %s34, 2
      %s36 = scalar_select %p35, 0, %s34
      %s37 = sadd.s32 1, %s28
      %s38 = scalar_select %p35, %s37, %s28
      %p39 = scmp.ge.s32.totalorder %s38, 2
      %s40 = scalar_select %p39, 0, %s38
      %s41 = ssub.s32 %s29, %s36
      %p42 = scmp.eq.s32.totalorder %s41, 0
      %s44 = sadd.s32 %s43, 1
      %s45 = scalar_select %p42, %s43, %s44
      %p48 = pneg %p42
      %p49 = scmp.eq.s32.totalorder %s21, 3
      %p50 = por %p48, %p49
      %p51 = scmp.ne.s32.totalorder %s43, %s46
      %p52 = scmp.eq.s32.totalorder %s21, 0
      %p53 = por %p51, %p52
      %p54 = scmp.ne.s32.totalorder %s43, %s46
      %p55 = scmp.eq.s32.totalorder %s26, 3
      %p56 = por %p54, %p55
      %p57 = scmp.ne.s32.totalorder %s46, %s47
      %p58 = scmp.eq.s32.totalorder %s26, 0
      %p59 = por %p57, %p58
      %p60 = scmp.ne.s32.totalorder %s46, %s47
      %p61 = scmp.eq.s32.totalorder %s27, 3
      %p62 = por %p60, %p61
      %p64 = scmp.ne.s32.totalorder %s47, %s63
      %p65 = scmp.eq.s32.totalorder %s27, 0
      %p66 = por %p64, %p65
      %s67 = ssub.s32 %s29, %s36
      %s68 = ssub.s32 %s28, %s40
      %s69 = sor.u32 %s67, %s68
      %p70 = scmp.eq.s32.totalorder %s69, 0
      %s72 = sadd.s32 %s71, 1
      %s73 = scalar_select %p70, %s71, %s72
      %p76 = pneg %p70
      %p77 = scmp.eq.s32.totalorder %s21, 3
      %p78 = por %p76, %p77
      %p79 = scmp.ne.s32.totalorder %s71, %s74
      %p80 = scmp.eq.s32.totalorder %s21, 0
      %p81 = por %p79, %p80
      %p82 = scmp.ne.s32.totalorder %s71, %s74
      %p83 = scmp.eq.s32.totalorder %s26, 3
      %p84 = por %p82, %p83
      %p85 = scmp.ne.s32.totalorder %s74, %s75
      %p86 = scmp.eq.s32.totalorder %s26, 0
      %p87 = por %p85, %p86
      %p88 = scmp.ne.s32.totalorder %s74, %s75
      %p89 = scmp.eq.s32.totalorder %s27, 3
      %p90 = por %p88, %p89
      %p92 = scmp.ne.s32.totalorder %s75, %s91
      %p93 = scmp.eq.s32.totalorder %s27, 0
      %p94 = por %p92, %p93
      %s96 = sadd.s32 %s95, 1
      %p99 = scmp.eq.s32.totalorder %s21, 3
      %p100 = scmp.ne.s32.totalorder %s95, %s97
      %p101 = scmp.eq.s32.totalorder %s21, 0
      %p102 = por %p100, %p101
      %p103 = scmp.ne.s32.totalorder %s95, %s97
      %p104 = scmp.eq.s32.totalorder %s26, 3
      %p105 = por %p103, %p104
      %p106 = scmp.ne.s32.totalorder %s97, %s98
      %p107 = scmp.eq.s32.totalorder %s26, 0
      %p108 = por %p106, %p107
      %p109 = scmp.ne.s32.totalorder %s97, %s98
      %p110 = scmp.eq.s32.totalorder %s27, 3
      %p111 = por %p109, %p110
      %p113 = scmp.ne.s32.totalorder %s98, %s112
      %p114 = scmp.eq.s32.totalorder %s27, 0
      %p115 = por %p113, %p114
      %s117 = sadd.s32 %s116, 1
      %p120 = scmp.eq.s32.totalorder %s21, 3
      %p121 = scmp.ne.s32.totalorder %s116, %s118
      %p122 = scmp.eq.s32.totalorder %s21, 0
      %p123 = por %p121, %p122
      %p124 = scmp.ne.s32.totalorder %s116, %s118
      %p125 = scmp.eq.s32.totalorder %s26, 3
      %p126 = por %p124, %p125
      %p127 = scmp.ne.s32.totalorder %s118, %s119
      %p128 = scmp.eq.s32.totalorder %s26, 0
      %p129 = por %p127, %p128
      %p130 = scmp.ne.s32.totalorder %s118, %s119
      %p131 = scmp.eq.s32.totalorder %s27, 3
      %p132 = por %p130, %p131
      %p134 = scmp.ne.s32.totalorder %s119, %s133
      %p135 = scmp.eq.s32.totalorder %s27, 0
      %p136 = por %p134, %p135
      %s138 = sadd.s32 %s137, 1
      %p141 = scmp.eq.s32.totalorder %s21, 3
      %p142 = scmp.ne.s32.totalorder %s137, %s139
      %p143 = scmp.eq.s32.totalorder %s21, 0
      %p144 = por %p142, %p143
      %p145 = scmp.ne.s32.totalorder %s137, %s139
      %p146 = scmp.eq.s32.totalorder %s26, 3
      %p147 = por %p145, %p146
      %p148 = scmp.ne.s32.totalorder %s139, %s140
      %p149 = scmp.eq.s32.totalorder %s26, 0
      %p150 = por %p148, %p149
      %p151 = scmp.ne.s32.totalorder %s139, %s140
      %p152 = scmp.eq.s32.totalorder %s27, 3
      %p153 = por %p151, %p152
      %p155 = scmp.ne.s32.totalorder %s140, %s154
      %p156 = scmp.eq.s32.totalorder %s27, 0
      %p157 = por %p155, %p156
      %s159 = sadd.s32 %s158, 1
      %p162 = scmp.eq.s32.totalorder %s21, 3
      %p163 = scmp.ne.s32.totalorder %s158, %s160
      %p164 = scmp.eq.s32.totalorder %s21, 0
      %p165 = por %p163, %p164
      %p166 = scmp.ne.s32.totalorder %s158, %s160
      %p167 = scmp.eq.s32.totalorder %s26, 3
      %p168 = por %p166, %p167
      %p169 = scmp.ne.s32.totalorder %s160, %s161
      %p170 = scmp.eq.s32.totalorder %s26, 0
      %p171 = por %p169, %p170
      %p172 = scmp.ne.s32.totalorder %s160, %s161
      %p173 = scmp.eq.s32.totalorder %s27, 3
      %p174 = por %p172, %p173
      %p176 = scmp.ne.s32.totalorder %s161, %s175
      %p177 = scmp.eq.s32.totalorder %s27, 0
      %p178 = por %p176, %p177
      %s179 = ssub.s32 %s28, %s40
      %p180 = scmp.eq.s32.totalorder %s179, 0
      %s182 = sadd.s32 %s181, 1
      %s183 = scalar_select %p180, %s181, %s182
      %p186 = pneg %p180
      %p187 = scmp.eq.s32.totalorder %s21, 3
      %p188 = por %p186, %p187
      %p189 = scmp.ne.s32.totalorder %s181, %s184
      %p190 = scmp.eq.s32.totalorder %s21, 0
      %p191 = por %p189, %p190
      %p192 = scmp.ne.s32.totalorder %s181, %s184
      %p193 = scmp.eq.s32.totalorder %s26, 3
      %p194 = por %p192, %p193
      %p195 = scmp.ne.s32.totalorder %s184, %s185
      %p196 = scmp.eq.s32.totalorder %s26, 0
      %p197 = por %p195, %p196
      %p198 = scmp.ne.s32.totalorder %s184, %s185
      %p199 = scmp.eq.s32.totalorder %s27, 3
      %p200 = por %p198, %p199
      %p202 = scmp.ne.s32.totalorder %s185, %s201
      %p203 = scmp.eq.s32.totalorder %s27, 0
      %p204 = por %p202, %p203
      %p205 = scmp.le.s32.totalorder 1, %s21
      %p206 = scmp.lt.s32.totalorder %s21, 5
      %p207 = pnand %p205, %p206
      %p208 = pneg %p207
      // Predicated region
      $region9: #{tpu_custom_call.1} parent=5 // pred_check
        _
      $region10: #{tpu_custom_call.1} parent=5 // pred_check_branch
        %210 = sbr.rel (%p207) target = $region12
      $region11: #{tpu_custom_call.1} parent=5 // pred_region
        %s211 = ssub.s32 %s21, 1
        // Predicated region
        $region13: #{tpu_custom_call.1} parent=11 // pred_check
          %p212 = pneg %p108
        $region14: #{tpu_custom_call.1} parent=11 // pred_check_branch
          %214 = sbr.rel (%p212) target = $region16
        $region15: #{tpu_custom_call.1} parent=11 // pred_region
          %s216 = ssub.s32 4096, 4096
          %217 = vsyncadd [#allocation7], %s216
          %s218 = sshll.u32 [#allocation8], 4
          %s219 = int_to_ptr.vmem [resolvable:$true] %s218
          %224 = dma.hbm_to_vmem [thread:$0]  %s2, 4096, %s219, [#allocation7], 256, 256, 16
        $region16: #{tpu_custom_call.1} parent=11 // pred_fallthru
          _
        // Predicated region
        $region17: #{tpu_custom_call.1} parent=11 // pred_check
          %p225 = pneg %p129
        $region18: #{tpu_custom_call.1} parent=11 // pred_check_branch
          %227 = sbr.rel (%p225) target = $region20
        $region19: #{tpu_custom_call.1} parent=11 // pred_region
          _
        $region20: #{tpu_custom_call.1} parent=11 // pred_fallthru
          _
        // Predicated region
        $region21: #{tpu_custom_call.1} parent=11 // pred_check
          %p228 = pneg %p150
        $region22: #{tpu_custom_call.1} parent=11 // pred_check_branch
          %230 = sbr.rel (%p228) target = $region24
        $region23: #{tpu_custom_call.1} parent=11 // pred_region
          _
        $region24: #{tpu_custom_call.1} parent=11 // pred_fallthru
          _
        // Predicated region
        $region25: #{tpu_custom_call.1} parent=11 // pred_check
          %p231 = pneg %p171
        $region26: #{tpu_custom_call.1} parent=11 // pred_check_branch
          %233 = sbr.rel (%p231) target = $region28
        $region27: #{tpu_custom_call.1} parent=11 // pred_region
          _
        $region28: #{tpu_custom_call.1} parent=11 // pred_fallthru
          _
      $region12: #{tpu_custom_call.1} parent=5 // pred_fallthru
        _
      %p234 = scmp.lt.s32.totalorder %s21, 4
      // Predicated region
      $region29: #{tpu_custom_call.1} parent=5 // pred_check
        %p235 = pneg %p234
      $region30: #{tpu_custom_call.1} parent=5 // pred_check_branch
        %237 = sbr.rel (%p235) target = $region32
      $region31: #{tpu_custom_call.1} parent=5 // pred_region
        // Predicated region
        $region33: #{tpu_custom_call.1} parent=31 // pred_check
          %p238 = pneg %p53
        $region34: #{tpu_custom_call.1} parent=31 // pred_check_branch
          %240 = sbr.rel (%p238) target = $region36
        $region35: #{tpu_custom_call.1} parent=31 // pred_region
          %s241 = sand.u32 %s43, 1
          %s242 = scalar_lea.sflag [#allocation4], %s241
          %s243 = sand.u32 %s43, 1
          %s244 = smul.addr %s243, 256
          %s245 = scalar_lea.vmem [#allocation3], %s244
          %s247 = ssub.s32 4096, 4096
          %248 = vsyncadd %s242, %s247
          %s249 = smul.addr %s29, 128
          %s250 = scalar_lea.hbm %s0, %s249
          %s251 = sshll.u32 %s245, 4
          %s252 = int_to_ptr.vmem [resolvable:$true] %s251
          %257 = dma.hbm_to_vmem [thread:$0]  %s250, 4096, %s252, %s242, 256, 128, 8
        $region36: #{tpu_custom_call.1} parent=31 // pred_fallthru
          _
        // Predicated region
        $region37: #{tpu_custom_call.1} parent=31 // pred_check
          %p258 = pneg %p81
        $region38: #{tpu_custom_call.1} parent=31 // pred_check_branch
          %260 = sbr.rel (%p258) target = $region40
        $region39: #{tpu_custom_call.1} parent=31 // pred_region
          %s261 = sand.u32 %s21, 1
          %s262 = scalar_lea.sflag [#allocation7], %s261
          %s263 = sand.u32 %s71, 1
          %s264 = smul.addr %s263, 128
          %s265 = scalar_lea.vmem [#allocation6], %s264
          %s266 = smul.u32 16, %s29
          %s268 = ssub.s32 2048, 2048
          %269 = vsyncadd %s262, %s268
          %s270 = smul.addr %s266, 2
          %s271 = sadd.s32 %s28, %s270
          %s272 = smul.addr %s271, 128
          %s273 = scalar_lea.hbm %s1, %s272
          %s274 = sshll.u32 %s265, 4
          %s275 = int_to_ptr.vmem [resolvable:$true] %s274
          %280 = dma.hbm_to_vmem [thread:$0]  %s273, 2048, %s275, %s262, 256, 128, 8
        $region40: #{tpu_custom_call.1} parent=31 // pred_fallthru
          _
      $region32: #{tpu_custom_call.1} parent=5 // pred_fallthru
        _
      %p281 = scmp.le.s32.totalorder 1, %s21
      %p282 = scmp.lt.s32.totalorder %s21, 5
      %p283 = pnand %p281, %p282
      %p284 = pneg %p283
      // Predicated region
      $region41: #{tpu_custom_call.1} parent=5 // pred_check
        _
      $region42: #{tpu_custom_call.1} parent=5 // pred_check_branch
        %286 = sbr.rel (%p283) target = $region44
      $region43: #{tpu_custom_call.1} parent=5 // pred_region
        %s287 = ssub.s32 %s21, 1
        %s288 = sand.u32 %s46, 1
        %s289 = scalar_lea.sflag [#allocation4], %s288
        %s290 = sand.u32 %s46, 1
        %s291 = smul.addr %s290, 256
        %s292 = scalar_lea.vmem [#allocation3], %s291
        // Predicated region
        $region45: #{tpu_custom_call.1} parent=43 // pred_check
          %p293 = pneg %p59
        $region46: #{tpu_custom_call.1} parent=43 // pred_check_branch
          %295 = sbr.rel (%p293) target = $region48
        $region47: #{tpu_custom_call.1} parent=43 // pred_region
          %296 = dma.done %s289, 4096
        $region48: #{tpu_custom_call.1} parent=43 // pred_fallthru
          _
        %s297 = sand.u32 %s26, 1
        %s298 = scalar_lea.sflag [#allocation7], %s297
        %s299 = sand.u32 %s74, 1
        %s300 = smul.addr %s299, 128
        %s301 = scalar_lea.vmem [#allocation6], %s300
        // Predicated region
        $region49: #{tpu_custom_call.1} parent=43 // pred_check
          %p302 = pneg %p87
        $region50: #{tpu_custom_call.1} parent=43 // pred_check_branch
          %304 = sbr.rel (%p302) target = $region52
        $region51: #{tpu_custom_call.1} parent=43 // pred_region
          %305 = dma.done %s298, 2048
        $region52: #{tpu_custom_call.1} parent=43 // pred_fallthru
          _
        // Predicated region
        $region53: #{tpu_custom_call.1} parent=43 // pred_check
          %p306 = pneg %p108
        $region54: #{tpu_custom_call.1} parent=43 // pred_check_branch
          %308 = sbr.rel (%p306) target = $region56
        $region55: #{tpu_custom_call.1} parent=43 // pred_region
          %309 = dma.done [#allocation7], 4096
        $region56: #{tpu_custom_call.1} parent=43 // pred_fallthru
          _
        %s310 = sand.u32 %s46, 1
        %s311 = scalar_lea.sflag [#allocation4], %s310
        %s312 = sand.u32 %s46, 1
        %s313 = smul.addr %s312, 256
        %s314 = scalar_lea.vmem [#allocation3], %s313
        %p315 = pneg %p59
        %p316 = pneg %p56
        %s317 = sand.u32 %s26, 1
        %s318 = scalar_lea.sflag [#allocation7], %s317
        %s319 = sand.u32 %s74, 1
        %s320 = smul.addr %s319, 128
        %s321 = scalar_lea.vmem [#allocation6], %s320
        %p322 = pneg %p87
        %p323 = pneg %p84
        %p324 = pneg %p108
        %p325 = pneg %p105
        %p326 = pneg %p129
        %p327 = pneg %p126
        %p328 = pneg %p150
        %p329 = pneg %p147
        %p330 = pneg %p171
        %p331 = pneg %p168
        %p332 = pneg %p197
        %p333 = pneg %p194
        %s334 = sand.u32 %s184, 1
        %s335 = scalar_lea.sflag [#allocation5], %s334
        %s336 = sand.u32 %s184, 1
        %s337 = smul.addr %s336, 64
        %s338 = scalar_lea.vmem [#allocation9], %s337
        %s339 = smul.u32 16, %s31
        %p340 = scmp.eq.s32.totalorder %s31, 0
        // Predicated region
        $region57: #{tpu_custom_call.1} parent=43 // pred_check
          %p341 = pneg %p340
        $region58: #{tpu_custom_call.1} parent=43 // pred_check_branch
          %343 = sbr.rel (%p341) target = $region60
        $region59: #{tpu_custom_call.1} parent=43 // pred_region
          %344 = vst [vmem:[#allocation2] sm:$0xff] 0.0
          %345 = vst [vmem:[#allocation2 + $0x8] sm:$0xff] 0.0
          %346 = vst [vmem:[#allocation2 + $0x10] sm:$0xff] 0.0
          %347 = vst [vmem:[#allocation2 + $0x18] sm:$0xff] 0.0
          %348 = vst [vmem:[#allocation2 + $0x20] sm:$0xff] 0.0
          %349 = vst [vmem:[#allocation2 + $0x28] sm:$0xff] 0.0
          %350 = vst [vmem:[#allocation2 + $0x30] sm:$0xff] 0.0
          %351 = vst [vmem:[#allocation2 + $0x38] sm:$0xff] 0.0
          %352 = vst [vmem:[#allocation2 + $0x40] sm:$0xff] 0.0
          %353 = vst [vmem:[#allocation2 + $0x48] sm:$0xff] 0.0
          %354 = vst [vmem:[#allocation2 + $0x50] sm:$0xff] 0.0
          %355 = vst [vmem:[#allocation2 + $0x58] sm:$0xff] 0.0
          %356 = vst [vmem:[#allocation2 + $0x60] sm:$0xff] 0.0
          %357 = vst [vmem:[#allocation2 + $0x68] sm:$0xff] 0.0
          %358 = vst [vmem:[#allocation2 + $0x70] sm:$0xff] 0.0
          %359 = vst [vmem:[#allocation2 + $0x78] sm:$0xff] 0.0
          %360 = vst [vmem:[#allocation2 + $0x80] sm:$0xff] 0.0
          %361 = vst [vmem:[#allocation2 + $0x88] sm:$0xff] 0.0
          %362 = vst [vmem:[#allocation2 + $0x90] sm:$0xff] 0.0
          %363 = vst [vmem:[#allocation2 + $0x98] sm:$0xff] 0.0
          %364 = vst [vmem:[#allocation2 + $0xa0] sm:$0xff] 0.0
          %365 = vst [vmem:[#allocation2 + $0xa8] sm:$0xff] 0.0
          %366 = vst [vmem:[#allocation2 + $0xb0] sm:$0xff] 0.0
          %367 = vst [vmem:[#allocation2 + $0xb8] sm:$0xff] 0.0
          %368 = vst [vmem:[#allocation2 + $0xc0] sm:$0xff] 0.0
          %369 = vst [vmem:[#allocation2 + $0xc8] sm:$0xff] 0.0
          %370 = vst [vmem:[#allocation2 + $0xd0] sm:$0xff] 0.0
          %371 = vst [vmem:[#allocation2 + $0xd8] sm:$0xff] 0.0
          %372 = vst [vmem:[#allocation2 + $0xe0] sm:$0xff] 0.0
          %373 = vst [vmem:[#allocation2 + $0xe8] sm:$0xff] 0.0
          %374 = vst [vmem:[#allocation2 + $0xf0] sm:$0xff] 0.0
          %375 = vst [vmem:[#allocation2 + $0xf8] sm:$0xff] 0.0
        $region60: #{tpu_custom_call.1} parent=43 // pred_fallthru
          _
        %v376 = vld [vmem:[#allocation2] sm:$0xff]
        %v377 = vld [vmem:[#allocation2 + $0x8] sm:$0xff]
        %v378 = vld [vmem:[#allocation2 + $0x10] sm:$0xff]
        %v379 = vld [vmem:[#allocation2 + $0x18] sm:$0xff]
        %v380 = vld [vmem:[#allocation2 + $0x20] sm:$0xff]
        %v381 = vld [vmem:[#allocation2 + $0x28] sm:$0xff]
        %v382 = vld [vmem:[#allocation2 + $0x30] sm:$0xff]
        %v383 = vld [vmem:[#allocation2 + $0x38] sm:$0xff]
        %v384 = vld [vmem:[#allocation2 + $0x40] sm:$0xff]
        %v385 = vld [vmem:[#allocation2 + $0x48] sm:$0xff]
        %v386 = vld [vmem:[#allocation2 + $0x50] sm:$0xff]
        %v387 = vld [vmem:[#allocation2 + $0x58] sm:$0xff]
        %v388 = vld [vmem:[#allocation2 + $0x60] sm:$0xff]
        %v389 = vld [vmem:[#allocation2 + $0x68] sm:$0xff]
        %v390 = vld [vmem:[#allocation2 + $0x70] sm:$0xff]
        %v391 = vld [vmem:[#allocation2 + $0x78] sm:$0xff]
        %v392 = vld [vmem:[#allocation2 + $0x80] sm:$0xff]
        %v393 = vld [vmem:[#allocation2 + $0x88] sm:$0xff]
        %v394 = vld [vmem:[#allocation2 + $0x90] sm:$0xff]
        %v395 = vld [vmem:[#allocation2 + $0x98] sm:$0xff]
        %v396 = vld [vmem:[#allocation2 + $0xa0] sm:$0xff]
        %v397 = vld [vmem:[#allocation2 + $0xa8] sm:$0xff]
        %v398 = vld [vmem:[#allocation2 + $0xb0] sm:$0xff]
        %v399 = vld [vmem:[#allocation2 + $0xb8] sm:$0xff]
        %v400 = vld [vmem:[#allocation2 + $0xc0] sm:$0xff]
        %v401 = vld [vmem:[#allocation2 + $0xc8] sm:$0xff]
        %v402 = vld [vmem:[#allocation2 + $0xd0] sm:$0xff]
        %v403 = vld [vmem:[#allocation2 + $0xd8] sm:$0xff]
        %v404 = vld [vmem:[#allocation2 + $0xe0] sm:$0xff]
        %v405 = vld [vmem:[#allocation2 + $0xe8] sm:$0xff]
        %v406 = vld [vmem:[#allocation2 + $0xf0] sm:$0xff]
        %v407 = vld [vmem:[#allocation2 + $0xf8] sm:$0xff]
        %v408 = vld [vmem:[%s292] sm:$0xff]
        %v409 = vld [vmem:[%s292 + $0x8] sm:$0xff]
        %v410 = vld [vmem:[%s292 + $0x10] sm:$0xff]
        %v411 = vld [vmem:[%s292 + $0x18] sm:$0xff]
        %v412 = vld [vmem:[%s292 + $0x20] sm:$0xff]
        %v413 = vld [vmem:[%s292 + $0x28] sm:$0xff]
        %v414 = vld [vmem:[%s292 + $0x30] sm:$0xff]
        %v415 = vld [vmem:[%s292 + $0x38] sm:$0xff]
        %v416 = vld [vmem:[%s292 + $0x40] sm:$0xff]
        %v417 = vld [vmem:[%s292 + $0x48] sm:$0xff]
        %v418 = vld [vmem:[%s292 + $0x50] sm:$0xff]
        %v419 = vld [vmem:[%s292 + $0x58] sm:$0xff]
        %v420 = vld [vmem:[%s292 + $0x60] sm:$0xff]
        %v421 = vld [vmem:[%s292 + $0x68] sm:$0xff]
        %v422 = vld [vmem:[%s292 + $0x70] sm:$0xff]
        %v423 = vld [vmem:[%s292 + $0x78] sm:$0xff]
        %v424 = vld [vmem:[%s292 + $0x80] sm:$0xff]
        %v425 = vld [vmem:[%s292 + $0x88] sm:$0xff]
        %v426 = vld [vmem:[%s292 + $0x90] sm:$0xff]
        %v427 = vld [vmem:[%s292 + $0x98] sm:$0xff]
        %v428 = vld [vmem:[%s292 + $0xa0] sm:$0xff]
        %v429 = vld [vmem:[%s292 + $0xa8] sm:$0xff]
        %v430 = vld [vmem:[%s292 + $0xb0] sm:$0xff]
        %v431 = vld [vmem:[%s292 + $0xb8] sm:$0xff]
        %v432 = vld [vmem:[%s292 + $0xc0] sm:$0xff]
        %v433 = vld [vmem:[%s292 + $0xc8] sm:$0xff]
        %v434 = vld [vmem:[%s292 + $0xd0] sm:$0xff]
        %v435 = vld [vmem:[%s292 + $0xd8] sm:$0xff]
        %v436 = vld [vmem:[%s292 + $0xe0] sm:$0xff]
        %v437 = vld [vmem:[%s292 + $0xe8] sm:$0xff]
        %v438 = vld [vmem:[%s292 + $0xf0] sm:$0xff]
        %v439 = vld [vmem:[%s292 + $0xf8] sm:$0xff]
        %v440 = vld [vmem:[%s301] sm:$0xff]
        %v441 = vld [vmem:[%s301 + $0x8] sm:$0xff]
        %v442 = vld [vmem:[%s301 + $0x10] sm:$0xff]
        %v443 = vld [vmem:[%s301 + $0x18] sm:$0xff]
        %v444 = vld [vmem:[%s301 + $0x20] sm:$0xff]
        %v445 = vld [vmem:[%s301 + $0x28] sm:$0xff]
        %v446 = vld [vmem:[%s301 + $0x30] sm:$0xff]
        %v447 = vld [vmem:[%s301 + $0x38] sm:$0xff]
        %v448 = vld [vmem:[%s301 + $0x40] sm:$0xff]
        %v449 = vld [vmem:[%s301 + $0x48] sm:$0xff]
        %v450 = vld [vmem:[%s301 + $0x50] sm:$0xff]
        %v451 = vld [vmem:[%s301 + $0x58] sm:$0xff]
        %v452 = vld [vmem:[%s301 + $0x60] sm:$0xff]
        %v453 = vld [vmem:[%s301 + $0x68] sm:$0xff]
        %v454 = vld [vmem:[%s301 + $0x70] sm:$0xff]
        %v455 = vld [vmem:[%s301 + $0x78] sm:$0xff]
        %456 = vmatprep.subr.mxu0 0.0
        %457 = vmatpush1.msra.mxu0 %v455
        %458 = vmatprep.subr.mxu0 0.0
        %459 = vmatpush1.msra.mxu0 %v454
        %460 = vmatprep.subr.mxu0 0.0
        %461 = vmatpush1.msra.mxu0 %v453
        %462 = vmatprep.subr.mxu0 0.0
        %463 = vmatpush1.msra.mxu0 %v452
        %464 = vmatprep.subr.mxu0 0.0
        %465 = vmatpush1.msra.mxu0 %v451
        %466 = vmatprep.subr.mxu0 0.0
        %467 = vmatpush1.msra.mxu0 %v450
        %468 = vmatprep.subr.mxu0 0.0
        %469 = vmatpush1.msra.mxu0 %v449
        %470 = vmatprep.subr.mxu0 0.0
        %471 = vmatpush1.msra.mxu0 %v448
        %472 = vmatprep.subr.mxu0 0.0
        %473 = vmatpush1.msra.mxu0 %v447
        %474 = vmatprep.subr.mxu0 0.0
        %475 = vmatpush1.msra.mxu0 %v446
        %476 = vmatprep.subr.mxu0 0.0
        %477 = vmatpush1.msra.mxu0 %v445
        %478 = vmatprep.subr.mxu0 0.0
        %479 = vmatpush1.msra.mxu0 %v444
        %480 = vmatprep.subr.mxu0 0.0
        %481 = vmatpush1.msra.mxu0 %v443
        %482 = vmatprep.subr.mxu0 0.0
        %483 = vmatpush1.msra.mxu0 %v442
        %484 = vmatprep.subr.mxu0 0.0
        %485 = vmatpush1.msra.mxu0 %v441
        %486 = vmatprep.subr.mxu0 0.0
        %487 = vmatpush1.msra.mxu0 %v440
        %488 = vmatprep.subr.mxu0 0.0
        %489 = vmatpush2.msra.mxu0 0.0
        %490 = vmatprep.subr.mxu0 0.0
        %491 = vmatpush2.msra.mxu0 0.0
        %492 = vmatprep.subr.mxu0 0.0
        %493 = vmatpush2.msra.mxu0 0.0
        %494 = vmatprep.subr.mxu0 0.0
        %495 = vmatpush2.msra.mxu0 0.0
        %496 = vmatprep.subr.mxu0 0.0
        %497 = vmatpush2.msra.mxu0 0.0
        %498 = vmatprep.subr.mxu0 0.0
        %499 = vmatpush2.msra.mxu0 0.0
        %500 = vmatprep.subr.mxu0 0.0
        %501 = vmatpush2.msra.mxu0 0.0
        %502 = vmatprep.subr.mxu0 0.0
        %503 = vmatpush2.msra.mxu0 0.0
        %504 = vmatprep.subr.mxu0 0.0
        %505 = vmatpush2.msra.mxu0 0.0
        %506 = vmatprep.subr.mxu0 0.0
        %507 = vmatpush2.msra.mxu0 0.0
        %508 = vmatprep.subr.mxu0 0.0
        %509 = vmatpush2.msra.mxu0 0.0
        %510 = vmatprep.subr.mxu0 0.0
        %511 = vmatpush2.msra.mxu0 0.0
        %512 = vmatprep.subr.mxu0 0.0
        %513 = vmatpush2.msra.mxu0 0.0
        %514 = vmatprep.subr.mxu0 0.0
        %515 = vmatpush2.msra.mxu0 0.0
        %516 = vmatprep.subr.mxu0 0.0
        %517 = vmatpush2.msra.mxu0 0.0
        %518 = vmatprep.subr.mxu0 0.0
        %519 = vmatpush2.msra.mxu0 0.0
        %520 = vmatprep.mubr.f32.mxu0 0.0
        %521 = vmatmul.mubr.f32.gmra.mxu0 %v408
        %v522 = vpop.f32.mrf.mxu0
        %v523 = vadd.f32 0.0, %v522
        %v524 = vpop.f32.mrf.mxu0
        %525 = vmatprep.mubr.f32.mxu0 0.0
        %526 = vmatmul.mubr.f32.gmra.mxu0 %v409
        %v527 = vpop.f32.mrf.mxu0
        %v528 = vadd.f32 0.0, %v527
        %v529 = vpop.f32.mrf.mxu0
        %530 = vmatprep.mubr.f32.mxu0 0.0
        %531 = vmatmul.mubr.f32.gmra.mxu0 %v410
        %v532 = vpop.f32.mrf.mxu0
        %v533 = vadd.f32 0.0, %v532
        %v534 = vpop.f32.mrf.mxu0
        %535 = vmatprep.mubr.f32.mxu0 0.0
        %536 = vmatmul.mubr.f32.gmra.mxu0 %v411
        %v537 = vpop.f32.mrf.mxu0
        %v538 = vadd.f32 0.0, %v537
        %v539 = vpop.f32.mrf.mxu0
        %540 = vmatprep.mubr.f32.mxu0 0.0
        %541 = vmatmul.mubr.f32.gmra.mxu0 %v412
        %v542 = vpop.f32.mrf.mxu0
        %v543 = vadd.f32 0.0, %v542
        %v544 = vpop.f32.mrf.mxu0
        %545 = vmatprep.mubr.f32.mxu0 0.0
        %546 = vmatmul.mubr.f32.gmra.mxu0 %v413
        %v547 = vpop.f32.mrf.mxu0
        %v548 = vadd.f32 0.0, %v547
        %v549 = vpop.f32.mrf.mxu0
        %550 = vmatprep.mubr.f32.mxu0 0.0
        %551 = vmatmul.mubr.f32.gmra.mxu0 %v414
        %v552 = vpop.f32.mrf.mxu0
        %v553 = vadd.f32 0.0, %v552
        %v554 = vpop.f32.mrf.mxu0
        %555 = vmatprep.mubr.f32.mxu0 0.0
        %556 = vmatmul.mubr.f32.gmra.mxu0 %v415
        %v557 = vpop.f32.mrf.mxu0
        %v558 = vadd.f32 0.0, %v557
        %v559 = vpop.f32.mrf.mxu0
        %560 = vmatprep.mubr.f32.mxu0 0.0
        %561 = vmatmul.mubr.f32.gmra.mxu0 %v416
        %v562 = vpop.f32.mrf.mxu0
        %v563 = vadd.f32 0.0, %v562
        %v564 = vpop.f32.mrf.mxu0
        %565 = vmatprep.mubr.f32.mxu0 0.0
        %566 = vmatmul.mubr.f32.gmra.mxu0 %v417
        %v567 = vpop.f32.mrf.mxu0
        %v568 = vadd.f32 0.0, %v567
        %v569 = vpop.f32.mrf.mxu0
        %570 = vmatprep.mubr.f32.mxu0 0.0
        %571 = vmatmul.mubr.f32.gmra.mxu0 %v418
        %v572 = vpop.f32.mrf.mxu0
        %v573 = vadd.f32 0.0, %v572
        %v574 = vpop.f32.mrf.mxu0
        %575 = vmatprep.mubr.f32.mxu0 0.0
        %576 = vmatmul.mubr.f32.gmra.mxu0 %v419
        %v577 = vpop.f32.mrf.mxu0
        %v578 = vadd.f32 0.0, %v577
        %v579 = vpop.f32.mrf.mxu0
        %580 = vmatprep.mubr.f32.mxu0 0.0
        %581 = vmatmul.mubr.f32.gmra.mxu0 %v420
        %v582 = vpop.f32.mrf.mxu0
        %v583 = vadd.f32 0.0, %v582
        %v584 = vpop.f32.mrf.mxu0
        %585 = vmatprep.mubr.f32.mxu0 0.0
        %586 = vmatmul.mubr.f32.gmra.mxu0 %v421
        %v587 = vpop.f32.mrf.mxu0
        %v588 = vadd.f32 0.0, %v587
        %v589 = vpop.f32.mrf.mxu0
        %590 = vmatprep.mubr.f32.mxu0 0.0
        %591 = vmatmul.mubr.f32.gmra.mxu0 %v422
        %v592 = vpop.f32.mrf.mxu0
        %v593 = vadd.f32 0.0, %v592
        %v594 = vpop.f32.mrf.mxu0
        %595 = vmatprep.mubr.f32.mxu0 0.0
        %596 = vmatmul.mubr.f32.gmra.mxu0 %v423
        %v597 = vpop.f32.mrf.mxu0
        %v598 = vadd.f32 0.0, %v597
        %v599 = vpop.f32.mrf.mxu0
        %600 = vmatprep.mubr.f32.mxu0 0.0
        %601 = vmatmul.mubr.f32.gmra.mxu0 %v424
        %v602 = vpop.f32.mrf.mxu0
        %v603 = vadd.f32 0.0, %v602
        %v604 = vpop.f32.mrf.mxu0
        %605 = vmatprep.mubr.f32.mxu0 0.0
        %606 = vmatmul.mubr.f32.gmra.mxu0 %v425
        %v607 = vpop.f32.mrf.mxu0
        %v608 = vadd.f32 0.0, %v607
        %v609 = vpop.f32.mrf.mxu0
        %610 = vmatprep.mubr.f32.mxu0 0.0
        %611 = vmatmul.mubr.f32.gmra.mxu0 %v426
        %v612 = vpop.f32.mrf.mxu0
        %v613 = vadd.f32 0.0, %v612
        %v614 = vpop.f32.mrf.mxu0
        %615 = vmatprep.mubr.f32.mxu0 0.0
        %616 = vmatmul.mubr.f32.gmra.mxu0 %v427
        %v617 = vpop.f32.mrf.mxu0
        %v618 = vadd.f32 0.0, %v617
        %v619 = vpop.f32.mrf.mxu0
        %620 = vmatprep.mubr.f32.mxu0 0.0
        %621 = vmatmul.mubr.f32.gmra.mxu0 %v428
        %v622 = vpop.f32.mrf.mxu0
        %v623 = vadd.f32 0.0, %v622
        %v624 = vpop.f32.mrf.mxu0
        %625 = vmatprep.mubr.f32.mxu0 0.0
        %626 = vmatmul.mubr.f32.gmra.mxu0 %v429
        %v627 = vpop.f32.mrf.mxu0
        %v628 = vadd.f32 0.0, %v627
        %v629 = vpop.f32.mrf.mxu0
        %630 = vmatprep.mubr.f32.mxu0 0.0
        %631 = vmatmul.mubr.f32.gmra.mxu0 %v430
        %v632 = vpop.f32.mrf.mxu0
        %v633 = vadd.f32 0.0, %v632
        %v634 = vpop.f32.mrf.mxu0
        %635 = vmatprep.mubr.f32.mxu0 0.0
        %636 = vmatmul.mubr.f32.gmra.mxu0 %v431
        %v637 = vpop.f32.mrf.mxu0
        %v638 = vadd.f32 0.0, %v637
        %v639 = vpop.f32.mrf.mxu0
        %640 = vmatprep.mubr.f32.mxu0 0.0
        %641 = vmatmul.mubr.f32.gmra.mxu0 %v432
        %v642 = vpop.f32.mrf.mxu0
        %v643 = vadd.f32 0.0, %v642
        %v644 = vpop.f32.mrf.mxu0
        %645 = vmatprep.mubr.f32.mxu0 0.0
        %646 = vmatmul.mubr.f32.gmra.mxu0 %v433
        %v647 = vpop.f32.mrf.mxu0
        %v648 = vadd.f32 0.0, %v647
        %v649 = vpop.f32.mrf.mxu0
        %650 = vmatprep.mubr.f32.mxu0 0.0
        %651 = vmatmul.mubr.f32.gmra.mxu0 %v434
        %v652 = vpop.f32.mrf.mxu0
        %v653 = vadd.f32 0.0, %v652
        %v654 = vpop.f32.mrf.mxu0
        %655 = vmatprep.mubr.f32.mxu0 0.0
        %656 = vmatmul.mubr.f32.gmra.mxu0 %v435
        %v657 = vpop.f32.mrf.mxu0
        %v658 = vadd.f32 0.0, %v657
        %v659 = vpop.f32.mrf.mxu0
        %660 = vmatprep.mubr.f32.mxu0 0.0
        %661 = vmatmul.mubr.f32.gmra.mxu0 %v436
        %v662 = vpop.f32.mrf.mxu0
        %v663 = vadd.f32 0.0, %v662
        %v664 = vpop.f32.mrf.mxu0
        %665 = vmatprep.mubr.f32.mxu0 0.0
        %666 = vmatmul.mubr.f32.gmra.mxu0 %v437
        %v667 = vpop.f32.mrf.mxu0
        %v668 = vadd.f32 0.0, %v667
        %v669 = vpop.f32.mrf.mxu0
        %670 = vmatprep.mubr.f32.mxu0 0.0
        %671 = vmatmul.mubr.f32.gmra.mxu0 %v438
        %v672 = vpop.f32.mrf.mxu0
        %v673 = vadd.f32 0.0, %v672
        %v674 = vpop.f32.mrf.mxu0
        %675 = vmatprep.mubr.f32.mxu0 0.0
        %676 = vmatmul.mubr.f32.gmra.mxu0 %v439
        %v677 = vpop.f32.mrf.mxu0
        %v678 = vadd.f32 0.0, %v677
        %v679 = vpop.f32.mrf.mxu0
        %680 = vdwg.mxu0
        %v681 = vadd.f32 %v376, %v523
        %v682 = vadd.f32 %v377, %v528
        %v683 = vadd.f32 %v378, %v533
        %v684 = vadd.f32 %v379, %v538
        %v685 = vadd.f32 %v380, %v543
        %v686 = vadd.f32 %v381, %v548
        %v687 = vadd.f32 %v382, %v553
        %v688 = vadd.f32 %v383, %v558
        %v689 = vadd.f32 %v384, %v563
        %v690 = vadd.f32 %v385, %v568
        %v691 = vadd.f32 %v386, %v573
        %v692 = vadd.f32 %v387, %v578
        %v693 = vadd.f32 %v388, %v583
        %v694 = vadd.f32 %v389, %v588
        %v695 = vadd.f32 %v390, %v593
        %v696 = vadd.f32 %v391, %v598
        %v697 = vadd.f32 %v392, %v603
        %v698 = vadd.f32 %v393, %v608
        %v699 = vadd.f32 %v394, %v613
        %v700 = vadd.f32 %v395, %v618
        %v701 = vadd.f32 %v396, %v623
        %v702 = vadd.f32 %v397, %v628
        %v703 = vadd.f32 %v398, %v633
        %v704 = vadd.f32 %v399, %v638
        %v705 = vadd.f32 %v400, %v643
        %v706 = vadd.f32 %v401, %v648
        %v707 = vadd.f32 %v402, %v653
        %v708 = vadd.f32 %v403, %v658
        %v709 = vadd.f32 %v404, %v663
        %v710 = vadd.f32 %v405, %v668
        %v711 = vadd.f32 %v406, %v673
        %v712 = vadd.f32 %v407, %v678
        %713 = vst [vmem:[#allocation2] sm:$0xff] %v681
        %714 = vst [vmem:[#allocation2 + $0x8] sm:$0xff] %v682
        %715 = vst [vmem:[#allocation2 + $0x10] sm:$0xff] %v683
        %716 = vst [vmem:[#allocation2 + $0x18] sm:$0xff] %v684
        %717 = vst [vmem:[#allocation2 + $0x20] sm:$0xff] %v685
        %718 = vst [vmem:[#allocation2 + $0x28] sm:$0xff] %v686
        %719 = vst [vmem:[#allocation2 + $0x30] sm:$0xff] %v687
        %720 = vst [vmem:[#allocation2 + $0x38] sm:$0xff] %v688
        %721 = vst [vmem:[#allocation2 + $0x40] sm:$0xff] %v689
        %722 = vst [vmem:[#allocation2 + $0x48] sm:$0xff] %v690
        %723 = vst [vmem:[#allocation2 + $0x50] sm:$0xff] %v691
        %724 = vst [vmem:[#allocation2 + $0x58] sm:$0xff] %v692
        %725 = vst [vmem:[#allocation2 + $0x60] sm:$0xff] %v693
        %726 = vst [vmem:[#allocation2 + $0x68] sm:$0xff] %v694
        %727 = vst [vmem:[#allocation2 + $0x70] sm:$0xff] %v695
        %728 = vst [vmem:[#allocation2 + $0x78] sm:$0xff] %v696
        %729 = vst [vmem:[#allocation2 + $0x80] sm:$0xff] %v697
        %730 = vst [vmem:[#allocation2 + $0x88] sm:$0xff] %v698
        %731 = vst [vmem:[#allocation2 + $0x90] sm:$0xff] %v699
        %732 = vst [vmem:[#allocation2 + $0x98] sm:$0xff] %v700
        %733 = vst [vmem:[#allocation2 + $0xa0] sm:$0xff] %v701
        %734 = vst [vmem:[#allocation2 + $0xa8] sm:$0xff] %v702
        %735 = vst [vmem:[#allocation2 + $0xb0] sm:$0xff] %v703
        %736 = vst [vmem:[#allocation2 + $0xb8] sm:$0xff] %v704
        %737 = vst [vmem:[#allocation2 + $0xc0] sm:$0xff] %v705
        %738 = vst [vmem:[#allocation2 + $0xc8] sm:$0xff] %v706
        %739 = vst [vmem:[#allocation2 + $0xd0] sm:$0xff] %v707
        %740 = vst [vmem:[#allocation2 + $0xd8] sm:$0xff] %v708
        %741 = vst [vmem:[#allocation2 + $0xe0] sm:$0xff] %v709
        %742 = vst [vmem:[#allocation2 + $0xe8] sm:$0xff] %v710
        %743 = vst [vmem:[#allocation2 + $0xf0] sm:$0xff] %v711
        %744 = vst [vmem:[#allocation2 + $0xf8] sm:$0xff] %v712
        %p745 = scmp.eq.s32.totalorder %s31, 1
        // Predicated region
        $region61: #{tpu_custom_call.1} parent=43 // pred_check
          %p746 = pneg %p745
        $region62: #{tpu_custom_call.1} parent=43 // pred_check_branch
          %748 = sbr.rel (%p746) target = $region64
        $region63: #{tpu_custom_call.1} parent=43 // pred_region
          %v749 = vld [vmem:[#allocation8] sm:$0xff]
          %v750 = vld [vmem:[#allocation8 + $0x8] sm:$0xff]
          %v751 = vld [vmem:[#allocation8 + $0x10] sm:$0xff]
          %v752 = vld [vmem:[#allocation8 + $0x18] sm:$0xff]
          %v753 = vld [vmem:[#allocation8 + $0x20] sm:$0xff]
          %v754 = vld [vmem:[#allocation8 + $0x28] sm:$0xff]
          %v755 = vld [vmem:[#allocation8 + $0x30] sm:$0xff]
          %v756 = vld [vmem:[#allocation8 + $0x38] sm:$0xff]
          %v757 = vld [vmem:[#allocation8 + $0x40] sm:$0xff]
          %v758 = vld [vmem:[#allocation8 + $0x48] sm:$0xff]
          %v759 = vld [vmem:[#allocation8 + $0x50] sm:$0xff]
          %v760 = vld [vmem:[#allocation8 + $0x58] sm:$0xff]
          %v761 = vld [vmem:[#allocation8 + $0x60] sm:$0xff]
          %v762 = vld [vmem:[#allocation8 + $0x68] sm:$0xff]
          %v763 = vld [vmem:[#allocation8 + $0x70] sm:$0xff]
          %v764 = vld [vmem:[#allocation8 + $0x78] sm:$0xff]
          %v765 = vld [vmem:[#allocation8 + $0x80] sm:$0xff]
          %v766 = vld [vmem:[#allocation8 + $0x88] sm:$0xff]
          %v767 = vld [vmem:[#allocation8 + $0x90] sm:$0xff]
          %v768 = vld [vmem:[#allocation8 + $0x98] sm:$0xff]
          %v769 = vld [vmem:[#allocation8 + $0xa0] sm:$0xff]
          %v770 = vld [vmem:[#allocation8 + $0xa8] sm:$0xff]
          %v771 = vld [vmem:[#allocation8 + $0xb0] sm:$0xff]
          %v772 = vld [vmem:[#allocation8 + $0xb8] sm:$0xff]
          %v773 = vld [vmem:[#allocation8 + $0xc0] sm:$0xff]
          %v774 = vld [vmem:[#allocation8 + $0xc8] sm:$0xff]
          %v775 = vld [vmem:[#allocation8 + $0xd0] sm:$0xff]
          %v776 = vld [vmem:[#allocation8 + $0xd8] sm:$0xff]
          %v777 = vld [vmem:[#allocation8 + $0xe0] sm:$0xff]
          %v778 = vld [vmem:[#allocation8 + $0xe8] sm:$0xff]
          %v779 = vld [vmem:[#allocation8 + $0xf0] sm:$0xff]
          %v780 = vld [vmem:[#allocation8 + $0xf8] sm:$0xff]
          %v781 = vld [vmem:[#allocation2] sm:$0xff]
          %v782 = vld [vmem:[#allocation2 + $0x8] sm:$0xff]
          %v783 = vld [vmem:[#allocation2 + $0x10] sm:$0xff]
          %v784 = vld [vmem:[#allocation2 + $0x18] sm:$0xff]
          %v785 = vld [vmem:[#allocation2 + $0x20] sm:$0xff]
          %v786 = vld [vmem:[#allocation2 + $0x28] sm:$0xff]
          %v787 = vld [vmem:[#allocation2 + $0x30] sm:$0xff]
          %v788 = vld [vmem:[#allocation2 + $0x38] sm:$0xff]
          %v789 = vld [vmem:[#allocation2 + $0x40] sm:$0xff]
          %v790 = vld [vmem:[#allocation2 + $0x48] sm:$0xff]
          %v791 = vld [vmem:[#allocation2 + $0x50] sm:$0xff]
          %v792 = vld [vmem:[#allocation2 + $0x58] sm:$0xff]
          %v793 = vld [vmem:[#allocation2 + $0x60] sm:$0xff]
          %v794 = vld [vmem:[#allocation2 + $0x68] sm:$0xff]
          %v795 = vld [vmem:[#allocation2 + $0x70] sm:$0xff]
          %v796 = vld [vmem:[#allocation2 + $0x78] sm:$0xff]
          %v797 = vld [vmem:[#allocation2 + $0x80] sm:$0xff]
          %v798 = vld [vmem:[#allocation2 + $0x88] sm:$0xff]
          %v799 = vld [vmem:[#allocation2 + $0x90] sm:$0xff]
          %v800 = vld [vmem:[#allocation2 + $0x98] sm:$0xff]
          %v801 = vld [vmem:[#allocation2 + $0xa0] sm:$0xff]
          %v802 = vld [vmem:[#allocation2 + $0xa8] sm:$0xff]
          %v803 = vld [vmem:[#allocation2 + $0xb0] sm:$0xff]
          %v804 = vld [vmem:[#allocation2 + $0xb8] sm:$0xff]
          %v805 = vld [vmem:[#allocation2 + $0xc0] sm:$0xff]
          %v806 = vld [vmem:[#allocation2 + $0xc8] sm:$0xff]
          %v807 = vld [vmem:[#allocation2 + $0xd0] sm:$0xff]
          %v808 = vld [vmem:[#allocation2 + $0xd8] sm:$0xff]
          %v809 = vld [vmem:[#allocation2 + $0xe0] sm:$0xff]
          %v810 = vld [vmem:[#allocation2 + $0xe8] sm:$0xff]
          %v811 = vld [vmem:[#allocation2 + $0xf0] sm:$0xff]
          %v812 = vld [vmem:[#allocation2 + $0xf8] sm:$0xff]
          %v813 = vld [vmem:[%s3] sm:$0xff]
          %v814 = vld [vmem:[%s3 + $0x8] sm:$0xff]
          %v815 = vld [vmem:[%s3 + $0x10] sm:$0xff]
          %v816 = vld [vmem:[%s3 + $0x18] sm:$0xff]
          %v817 = vld [vmem:[%s3 + $0x20] sm:$0xff]
          %v818 = vld [vmem:[%s3 + $0x28] sm:$0xff]
          %v819 = vld [vmem:[%s3 + $0x30] sm:$0xff]
          %v820 = vld [vmem:[%s3 + $0x38] sm:$0xff]
          %v821 = vld [vmem:[%s3 + $0x40] sm:$0xff]
          %v822 = vld [vmem:[%s3 + $0x48] sm:$0xff]
          %v823 = vld [vmem:[%s3 + $0x50] sm:$0xff]
          %v824 = vld [vmem:[%s3 + $0x58] sm:$0xff]
          %v825 = vld [vmem:[%s3 + $0x60] sm:$0xff]
          %v826 = vld [vmem:[%s3 + $0x68] sm:$0xff]
          %v827 = vld [vmem:[%s3 + $0x70] sm:$0xff]
          %v828 = vld [vmem:[%s3 + $0x78] sm:$0xff]
          %830 = vset.pattern.permute.xlu0 0
          %831 = vperm.xlu0 %830, %v813
          %v832 = vpop.permute.xlu0 %831
          %835 = vset.pattern.permute.xlu0 0
          %836 = vperm.xlu0 %835, %v814
          %v837 = vpop.permute.xlu0 %836
          %840 = vset.pattern.permute.xlu0 0
          %841 = vperm.xlu0 %840, %v815
          %v842 = vpop.permute.xlu0 %841
          %845 = vset.pattern.permute.xlu0 0
          %846 = vperm.xlu0 %845, %v816
          %v847 = vpop.permute.xlu0 %846
          %850 = vset.pattern.permute.xlu0 0
          %851 = vperm.xlu0 %850, %v817
          %v852 = vpop.permute.xlu0 %851
          %855 = vset.pattern.permute.xlu0 0
          %856 = vperm.xlu0 %855, %v818
          %v857 = vpop.permute.xlu0 %856
          %860 = vset.pattern.permute.xlu0 0
          %861 = vperm.xlu0 %860, %v819
          %v862 = vpop.permute.xlu0 %861
          %865 = vset.pattern.permute.xlu0 0
          %866 = vperm.xlu0 %865, %v820
          %v867 = vpop.permute.xlu0 %866
          %870 = vset.pattern.permute.xlu0 0
          %871 = vperm.xlu0 %870, %v821
          %v872 = vpop.permute.xlu0 %871
          %875 = vset.pattern.permute.xlu0 0
          %876 = vperm.xlu0 %875, %v822
          %v877 = vpop.permute.xlu0 %876
          %880 = vset.pattern.permute.xlu0 0
          %881 = vperm.xlu0 %880, %v823
          %v882 = vpop.permute.xlu0 %881
          %885 = vset.pattern.permute.xlu0 0
          %886 = vperm.xlu0 %885, %v824
          %v887 = vpop.permute.xlu0 %886
          %890 = vset.pattern.permute.xlu0 0
          %891 = vperm.xlu0 %890, %v825
          %v892 = vpop.permute.xlu0 %891
          %895 = vset.pattern.permute.xlu0 0
          %896 = vperm.xlu0 %895, %v826
          %v897 = vpop.permute.xlu0 %896
          %900 = vset.pattern.permute.xlu0 0
          %901 = vperm.xlu0 %900, %v827
          %v902 = vpop.permute.xlu0 %901
          %905 = vset.pattern.permute.xlu0 0
          %906 = vperm.xlu0 %905, %v828
          %v907 = vpop.permute.xlu0 %906
          %909 = vmatprep.subr.mxu0 0.0
          %910 = vmatpush1.msra.mxu0 %v796
          %911 = vmatprep.subr.mxu0 0.0
          %912 = vmatpush1.msra.mxu0 %v795
          %913 = vmatprep.subr.mxu0 0.0
          %914 = vmatpush1.msra.mxu0 %v794
          %915 = vmatprep.subr.mxu0 0.0
          %916 = vmatpush1.msra.mxu0 %v793
          %917 = vmatprep.subr.mxu0 0.0
          %918 = vmatpush1.msra.mxu0 %v792
          %919 = vmatprep.subr.mxu0 0.0
          %920 = vmatpush1.msra.mxu0 %v791
          %921 = vmatprep.subr.mxu0 0.0
          %922 = vmatpush1.msra.mxu0 %v790
          %923 = vmatprep.subr.mxu0 0.0
          %924 = vmatpush1.msra.mxu0 %v789
          %925 = vmatprep.subr.mxu0 0.0
          %926 = vmatpush1.msra.mxu0 %v788
          %927 = vmatprep.subr.mxu0 0.0
          %928 = vmatpush1.msra.mxu0 %v787
          %929 = vmatprep.subr.mxu0 0.0
          %930 = vmatpush1.msra.mxu0 %v786
          %931 = vmatprep.subr.mxu0 0.0
          %932 = vmatpush1.msra.mxu0 %v785
          %933 = vmatprep.subr.mxu0 0.0
          %934 = vmatpush1.msra.mxu0 %v784
          %935 = vmatprep.subr.mxu0 0.0
          %936 = vmatpush1.msra.mxu0 %v783
          %937 = vmatprep.subr.mxu0 0.0
          %938 = vmatpush1.msra.mxu0 %v782
          %939 = vmatprep.subr.mxu0 0.0
          %940 = vmatpush1.msra.mxu0 %v781
          %941 = vmatprep.subr.mxu0 0.0
          %942 = vmatpush2.msra.mxu0 %v812
          %943 = vmatprep.subr.mxu0 0.0
          %944 = vmatpush2.msra.mxu0 %v811
          %945 = vmatprep.subr.mxu0 0.0
          %946 = vmatpush2.msra.mxu0 %v810
          %947 = vmatprep.subr.mxu0 0.0
          %948 = vmatpush2.msra.mxu0 %v809
          %949 = vmatprep.subr.mxu0 0.0
          %950 = vmatpush2.msra.mxu0 %v808
          %951 = vmatprep.subr.mxu0 0.0
          %952 = vmatpush2.msra.mxu0 %v807
          %953 = vmatprep.subr.mxu0 0.0
          %954 = vmatpush2.msra.mxu0 %v806
          %955 = vmatprep.subr.mxu0 0.0
          %956 = vmatpush2.msra.mxu0 %v805
          %957 = vmatprep.subr.mxu0 0.0
          %958 = vmatpush2.msra.mxu0 %v804
          %959 = vmatprep.subr.mxu0 0.0
          %960 = vmatpush2.msra.mxu0 %v803
          %961 = vmatprep.subr.mxu0 0.0
          %962 = vmatpush2.msra.mxu0 %v802
          %963 = vmatprep.subr.mxu0 0.0
          %964 = vmatpush2.msra.mxu0 %v801
          %965 = vmatprep.subr.mxu0 0.0
          %966 = vmatpush2.msra.mxu0 %v800
          %967 = vmatprep.subr.mxu0 0.0
          %968 = vmatpush2.msra.mxu0 %v799
          %969 = vmatprep.subr.mxu0 0.0
          %970 = vmatpush2.msra.mxu0 %v798
          %971 = vmatprep.subr.mxu0 0.0
          %972 = vmatpush2.msra.mxu0 %v797
          %973 = vmatprep.mubr.f32.mxu0 %v750
          %974 = vmatmul.mubr.f32.gmra.mxu0 %v749
          %v975 = vpop.f32.mrf.mxu0
          %v976 = vadd.f32 %v832, %v975
          %v977 = vpop.f32.mrf.mxu0
          %978 = vmatprep.mubr.f32.mxu0 %v752
          %979 = vmatmul.mubr.f32.gmra.mxu0 %v751
          %v980 = vpop.f32.mrf.mxu0
          %v981 = vadd.f32 %v837, %v980
          %v982 = vpop.f32.mrf.mxu0
          %983 = vmatprep.mubr.f32.mxu0 %v754
          %984 = vmatmul.mubr.f32.gmra.mxu0 %v753
          %v985 = vpop.f32.mrf.mxu0
          %v986 = vadd.f32 %v842, %v985
          %v987 = vpop.f32.mrf.mxu0
          %988 = vmatprep.mubr.f32.mxu0 %v756
          %989 = vmatmul.mubr.f32.gmra.mxu0 %v755
          %v990 = vpop.f32.mrf.mxu0
          %v991 = vadd.f32 %v847, %v990
          %v992 = vpop.f32.mrf.mxu0
          %993 = vmatprep.mubr.f32.mxu0 %v758
          %994 = vmatmul.mubr.f32.gmra.mxu0 %v757
          %v995 = vpop.f32.mrf.mxu0
          %v996 = vadd.f32 %v852, %v995
          %v997 = vpop.f32.mrf.mxu0
          %998 = vmatprep.mubr.f32.mxu0 %v760
          %999 = vmatmul.mubr.f32.gmra.mxu0 %v759
          %v1000 = vpop.f32.mrf.mxu0
          %v1001 = vadd.f32 %v857, %v1000
          %v1002 = vpop.f32.mrf.mxu0
          %1003 = vmatprep.mubr.f32.mxu0 %v762
          %1004 = vmatmul.mubr.f32.gmra.mxu0 %v761
          %v1005 = vpop.f32.mrf.mxu0
          %v1006 = vadd.f32 %v862, %v1005
          %v1007 = vpop.f32.mrf.mxu0
          %1008 = vmatprep.mubr.f32.mxu0 %v764
          %1009 = vmatmul.mubr.f32.gmra.mxu0 %v763
          %v1010 = vpop.f32.mrf.mxu0
          %v1011 = vadd.f32 %v867, %v1010
          %v1012 = vpop.f32.mrf.mxu0
          %1013 = vmatprep.mubr.f32.mxu0 %v766
          %1014 = vmatmul.mubr.f32.gmra.mxu0 %v765
          %v1015 = vpop.f32.mrf.mxu0
          %v1016 = vadd.f32 %v872, %v1015
          %v1017 = vpop.f32.mrf.mxu0
          %1018 = vmatprep.mubr.f32.mxu0 %v768
          %1019 = vmatmul.mubr.f32.gmra.mxu0 %v767
          %v1020 = vpop.f32.mrf.mxu0
          %v1021 = vadd.f32 %v877, %v1020
          %v1022 = vpop.f32.mrf.mxu0
          %1023 = vmatprep.mubr.f32.mxu0 %v770
          %1024 = vmatmul.mubr.f32.gmra.mxu0 %v769
          %v1025 = vpop.f32.mrf.mxu0
          %v1026 = vadd.f32 %v882, %v1025
          %v1027 = vpop.f32.mrf.mxu0
          %1028 = vmatprep.mubr.f32.mxu0 %v772
          %1029 = vmatmul.mubr.f32.gmra.mxu0 %v771
          %v1030 = vpop.f32.mrf.mxu0
          %v1031 = vadd.f32 %v887, %v1030
          %v1032 = vpop.f32.mrf.mxu0
          %1033 = vmatprep.mubr.f32.mxu0 %v774
          %1034 = vmatmul.mubr.f32.gmra.mxu0 %v773
          %v1035 = vpop.f32.mrf.mxu0
          %v1036 = vadd.f32 %v892, %v1035
          %v1037 = vpop.f32.mrf.mxu0
          %1038 = vmatprep.mubr.f32.mxu0 %v776
          %1039 = vmatmul.mubr.f32.gmra.mxu0 %v775
          %v1040 = vpop.f32.mrf.mxu0
          %v1041 = vadd.f32 %v897, %v1040
          %v1042 = vpop.f32.mrf.mxu0
          %1043 = vmatprep.mubr.f32.mxu0 %v778
          %1044 = vmatmul.mubr.f32.gmra.mxu0 %v777
          %v1045 = vpop.f32.mrf.mxu0
          %v1046 = vadd.f32 %v902, %v1045
          %v1047 = vpop.f32.mrf.mxu0
          %1048 = vmatprep.mubr.f32.mxu0 %v780
          %1049 = vmatmul.mubr.f32.gmra.mxu0 %v779
          %v1050 = vpop.f32.mrf.mxu0
          %v1051 = vadd.f32 %v907, %v1050
          %v1052 = vpop.f32.mrf.mxu0
          %1053 = vdwg.mxu0
          %v1054 = vmax.f32 %v976, 0.0
          %v1055 = vmax.f32 %v981, 0.0
          %v1056 = vmax.f32 %v986, 0.0
          %v1057 = vmax.f32 %v991, 0.0
          %v1058 = vmax.f32 %v996, 0.0
          %v1059 = vmax.f32 %v1001, 0.0
          %v1060 = vmax.f32 %v1006, 0.0
          %v1061 = vmax.f32 %v1011, 0.0
          %v1062 = vmax.f32 %v1016, 0.0
          %v1063 = vmax.f32 %v1021, 0.0
          %v1064 = vmax.f32 %v1026, 0.0
          %v1065 = vmax.f32 %v1031, 0.0
          %v1066 = vmax.f32 %v1036, 0.0
          %v1067 = vmax.f32 %v1041, 0.0
          %v1068 = vmax.f32 %v1046, 0.0
          %v1069 = vmax.f32 %v1051, 0.0
          %v1070 = vld [vmem:[%s4] sm:$0xff]
          %v1071 = vld [vmem:[%s4 + $0x8] sm:$0xff]
          %v1072 = vld [vmem:[%s4 + $0x10] sm:$0xff]
          %v1073 = vld [vmem:[%s4 + $0x18] sm:$0xff]
          %v1074 = vld [vmem:[%s4 + $0x20] sm:$0xff]
          %v1075 = vld [vmem:[%s4 + $0x28] sm:$0xff]
          %v1076 = vld [vmem:[%s4 + $0x30] sm:$0xff]
          %v1077 = vld [vmem:[%s4 + $0x38] sm:$0xff]
          %v1078 = vld [vmem:[%s5] sm:$0xff]
          %v1079 = vld [vmem:[%s5 + $0x8] sm:$0xff]
          %v1080 = vld [vmem:[%s5 + $0x10] sm:$0xff]
          %v1081 = vld [vmem:[%s5 + $0x18] sm:$0xff]
          %v1082 = vld [vmem:[%s5 + $0x20] sm:$0xff]
          %v1083 = vld [vmem:[%s5 + $0x28] sm:$0xff]
          %v1084 = vld [vmem:[%s5 + $0x30] sm:$0xff]
          %v1085 = vld [vmem:[%s5 + $0x38] sm:$0xff]
          %1087 = vset.pattern.permute.xlu0 0
          %1088 = vperm.xlu0 %1087, %v1078
          %v1089 = vpop.permute.xlu0 %1088
          %1092 = vset.pattern.permute.xlu0 0
          %1093 = vperm.xlu0 %1092, %v1079
          %v1094 = vpop.permute.xlu0 %1093
          %1097 = vset.pattern.permute.xlu0 0
          %1098 = vperm.xlu0 %1097, %v1080
          %v1099 = vpop.permute.xlu0 %1098
          %1102 = vset.pattern.permute.xlu0 0
          %1103 = vperm.xlu0 %1102, %v1081
          %v1104 = vpop.permute.xlu0 %1103
          %1107 = vset.pattern.permute.xlu0 0
          %1108 = vperm.xlu0 %1107, %v1082
          %v1109 = vpop.permute.xlu0 %1108
          %1112 = vset.pattern.permute.xlu0 0
          %1113 = vperm.xlu0 %1112, %v1083
          %v1114 = vpop.permute.xlu0 %1113
          %1117 = vset.pattern.permute.xlu0 0
          %1118 = vperm.xlu0 %1117, %v1084
          %v1119 = vpop.permute.xlu0 %1118
          %1122 = vset.pattern.permute.xlu0 0
          %1123 = vperm.xlu0 %1122, %v1085
          %v1124 = vpop.permute.xlu0 %1123
          %1126 = vmatprep.subr.mxu0 0.0
          %1127 = vmatpush1.msra.mxu0 %v1069
          %1128 = vmatprep.subr.mxu0 0.0
          %1129 = vmatpush1.msra.mxu0 %v1068
          %1130 = vmatprep.subr.mxu0 0.0
          %1131 = vmatpush1.msra.mxu0 %v1067
          %1132 = vmatprep.subr.mxu0 0.0
          %1133 = vmatpush1.msra.mxu0 %v1066
          %1134 = vmatprep.subr.mxu0 0.0
          %1135 = vmatpush1.msra.mxu0 %v1065
          %1136 = vmatprep.subr.mxu0 0.0
          %1137 = vmatpush1.msra.mxu0 %v1064
          %1138 = vmatprep.subr.mxu0 0.0
          %1139 = vmatpush1.msra.mxu0 %v1063
          %1140 = vmatprep.subr.mxu0 0.0
          %1141 = vmatpush1.msra.mxu0 %v1062
          %1142 = vmatprep.subr.mxu0 0.0
          %1143 = vmatpush1.msra.mxu0 %v1061
          %1144 = vmatprep.subr.mxu0 0.0
          %1145 = vmatpush1.msra.mxu0 %v1060
          %1146 = vmatprep.subr.mxu0 0.0
          %1147 = vmatpush1.msra.mxu0 %v1059
          %1148 = vmatprep.subr.mxu0 0.0
          %1149 = vmatpush1.msra.mxu0 %v1058
          %1150 = vmatprep.subr.mxu0 0.0
          %1151 = vmatpush1.msra.mxu0 %v1057
          %1152 = vmatprep.subr.mxu0 0.0
          %1153 = vmatpush1.msra.mxu0 %v1056
          %1154 = vmatprep.subr.mxu0 0.0
          %1155 = vmatpush1.msra.mxu0 %v1055
          %1156 = vmatprep.subr.mxu0 0.0
          %1157 = vmatpush1.msra.mxu0 %v1054
          %1158 = vmatprep.subr.mxu0 0.0
          %1159 = vmatpush2.msra.mxu0 0.0
          %1160 = vmatprep.subr.mxu0 0.0
          %1161 = vmatpush2.msra.mxu0 0.0
          %1162 = vmatprep.subr.mxu0 0.0
          %1163 = vmatpush2.msra.mxu0 0.0
          %1164 = vmatprep.subr.mxu0 0.0
          %1165 = vmatpush2.msra.mxu0 0.0
          %1166 = vmatprep.subr.mxu0 0.0
          %1167 = vmatpush2.msra.mxu0 0.0
          %1168 = vmatprep.subr.mxu0 0.0
          %1169 = vmatpush2.msra.mxu0 0.0
          %1170 = vmatprep.subr.mxu0 0.0
          %1171 = vmatpush2.msra.mxu0 0.0
          %1172 = vmatprep.subr.mxu0 0.0
          %1173 = vmatpush2.msra.mxu0 0.0
          %1174 = vmatprep.subr.mxu0 0.0
          %1175 = vmatpush2.msra.mxu0 0.0
          %1176 = vmatprep.subr.mxu0 0.0
          %1177 = vmatpush2.msra.mxu0 0.0
          %1178 = vmatprep.subr.mxu0 0.0
          %1179 = vmatpush2.msra.mxu0 0.0
          %1180 = vmatprep.subr.mxu0 0.0
          %1181 = vmatpush2.msra.mxu0 0.0
          %1182 = vmatprep.subr.mxu0 0.0
          %1183 = vmatpush2.msra.mxu0 0.0
          %1184 = vmatprep.subr.mxu0 0.0
          %1185 = vmatpush2.msra.mxu0 0.0
          %1186 = vmatprep.subr.mxu0 0.0
          %1187 = vmatpush2.msra.mxu0 0.0
          %1188 = vmatprep.subr.mxu0 0.0
          %1189 = vmatpush2.msra.mxu0 0.0
          %1190 = vmatprep.mubr.f32.mxu0 0.0
          %1191 = vmatmul.mubr.f32.gmra.mxu0 %v1070
          %v1192 = vpop.f32.mrf.mxu0
          %v1193 = vadd.f32 %v1089, %v1192
          %v1194 = vpop.f32.mrf.mxu0
          %1195 = vmatprep.mubr.f32.mxu0 0.0
          %1196 = vmatmul.mubr.f32.gmra.mxu0 %v1071
          %v1197 = vpop.f32.mrf.mxu0
          %v1198 = vadd.f32 %v1094, %v1197
          %v1199 = vpop.f32.mrf.mxu0
          %1200 = vmatprep.mubr.f32.mxu0 0.0
          %1201 = vmatmul.mubr.f32.gmra.mxu0 %v1072
          %v1202 = vpop.f32.mrf.mxu0
          %v1203 = vadd.f32 %v1099, %v1202
          %v1204 = vpop.f32.mrf.mxu0
          %1205 = vmatprep.mubr.f32.mxu0 0.0
          %1206 = vmatmul.mubr.f32.gmra.mxu0 %v1073
          %v1207 = vpop.f32.mrf.mxu0
          %v1208 = vadd.f32 %v1104, %v1207
          %v1209 = vpop.f32.mrf.mxu0
          %1210 = vmatprep.mubr.f32.mxu0 0.0
          %1211 = vmatmul.mubr.f32.gmra.mxu0 %v1074
          %v1212 = vpop.f32.mrf.mxu0
          %v1213 = vadd.f32 %v1109, %v1212
          %v1214 = vpop.f32.mrf.mxu0
          %1215 = vmatprep.mubr.f32.mxu0 0.0
          %1216 = vmatmul.mubr.f32.gmra.mxu0 %v1075
          %v1217 = vpop.f32.mrf.mxu0
          %v1218 = vadd.f32 %v1114, %v1217
          %v1219 = vpop.f32.mrf.mxu0
          %1220 = vmatprep.mubr.f32.mxu0 0.0
          %1221 = vmatmul.mubr.f32.gmra.mxu0 %v1076
          %v1222 = vpop.f32.mrf.mxu0
          %v1223 = vadd.f32 %v1119, %v1222
          %v1224 = vpop.f32.mrf.mxu0
          %1225 = vmatprep.mubr.f32.mxu0 0.0
          %1226 = vmatmul.mubr.f32.gmra.mxu0 %v1077
          %v1227 = vpop.f32.mrf.mxu0
          %v1228 = vadd.f32 %v1124, %v1227
          %v1229 = vpop.f32.mrf.mxu0
          %1230 = vdwg.mxu0
          %1231 = vst [vmem:[%s338] sm:$0xff] %v1193
          %1232 = vst [vmem:[%s338 + $0x8] sm:$0xff] %v1198
          %1233 = vst [vmem:[%s338 + $0x10] sm:$0xff] %v1203
          %1234 = vst [vmem:[%s338 + $0x18] sm:$0xff] %v1208
          %1235 = vst [vmem:[%s338 + $0x20] sm:$0xff] %v1213
          %1236 = vst [vmem:[%s338 + $0x28] sm:$0xff] %v1218
          %1237 = vst [vmem:[%s338 + $0x30] sm:$0xff] %v1223
          %1238 = vst [vmem:[%s338 + $0x38] sm:$0xff] %v1228
        $region64: #{tpu_custom_call.1} parent=43 // pred_fallthru
          _
        %s1239 = sand.u32 %s184, 1
        %s1240 = scalar_lea.sflag [#allocation5], %s1239
        %s1241 = sand.u32 %s184, 1
        %s1242 = smul.addr %s1241, 64
        %s1243 = scalar_lea.vmem [#allocation9], %s1242
        // Predicated region
        $region65: #{tpu_custom_call.1} parent=43 // pred_check
          %p1244 = pneg %p194
        $region66: #{tpu_custom_call.1} parent=43 // pred_check_branch
          %1246 = sbr.rel (%p1244) target = $region68
        $region67: #{tpu_custom_call.1} parent=43 // pred_region
          %s1248 = ssub.s32 1024, 1024
          %1249 = vsyncadd %s1240, %s1248
          %s1250 = smul.addr %s30, 128
          %s1251 = scalar_lea.hbm %s6, %s1250
          %s1252 = sshll.u32 %s1243, 4
          %s1253 = int_to_ptr.vmem [resolvable:$true] %s1252
          %1258 = dma.vmem_to_hbm [thread:$0]  %s1253, 1024, %s1251, %s1240, 128, 256, 8
        $region68: #{tpu_custom_call.1} parent=43 // pred_fallthru
          _
      $region44: #{tpu_custom_call.1} parent=5 // pred_fallthru
        _
      %p1259 = scmp.le.s32.totalorder 2, %s21
      // Predicated region
      $region69: #{tpu_custom_call.1} parent=5 // pred_check
        %p1260 = pneg %p1259
      $region70: #{tpu_custom_call.1} parent=5 // pred_check_branch
        %1262 = sbr.rel (%p1260) target = $region72
      $region71: #{tpu_custom_call.1} parent=5 // pred_region
        %s1263 = ssub.s32 %s21, 2
        // Predicated region
        $region73: #{tpu_custom_call.1} parent=71 // pred_check
          %p1264 = pneg %p200
        $region74: #{tpu_custom_call.1} parent=71 // pred_check_branch
          %1266 = sbr.rel (%p1264) target = $region76
        $region75: #{tpu_custom_call.1} parent=71 // pred_region
          %s1267 = sand.u32 %s185, 1
          %s1268 = scalar_lea.sflag [#allocation5], %s1267
          %s1269 = sand.u32 %s185, 1
          %s1270 = smul.addr %s1269, 64
          %s1271 = scalar_lea.vmem [#allocation9], %s1270
          %1272 = dma.done %s1268, 1024
        $region76: #{tpu_custom_call.1} parent=71 // pred_fallthru
          _
      $region72: #{tpu_custom_call.1} parent=5 // pred_fallthru
        _
    $region6: #{tpu_custom_call.1} parent=1 // loop_footer
      %s25 = sadd.s32 1, %s21
    $region7: #{tpu_custom_call.1} parent=1 // loop_footer_branch
      %20 = sbr.rel target = $region3
    $region8: #{tpu_custom_call.1} parent=1 // loop_exit
      _
    %1273 = vsyncpa [#allocation4], 1
    %s1274 = scalar_lea.sflag [#allocation4], 1
    %1275 = vsyncpa %s1274, 1
    %1276 = vsyncpa [#allocation7], 1
    %s1277 = scalar_lea.sflag [#allocation7], 1
    %1278 = vsyncpa %s1277, 1
    %1279 = vsyncpa [#allocation5], 1
    %s1280 = scalar_lea.sflag [#allocation5], 1
    %1281 = vsyncpa %s1280, 1

</llo_original>
